<compile_context>
chip_gen: v6e
topology: v6e:2x2x1
jax: 0.10.0
libtpu: 0.0.40
codegen_flags: <defaults>
</compile_context>

<pallas_src>
import functools

import jax
import jax.numpy as jnp
from jax.experimental import pallas as pl
from jax.experimental.pallas import tpu as pltpu

N_SYMBOL = 26
LANES = 128            # lane-dense padded feature width for the MXU/softmax
NEG_INF = -1e30        # padded-bias value: never wins the max, exp() -> 0 (f32 only!)


def _round_up(n, m):
    return ((n + m - 1) // m) * m


def _make_kernel(use_bf16_mxu):
    def kernel(x_ref, w_ref, b_ref, o_ref):
        # x_ref: (TB, 26), w_ref: (26, 128), b_ref: (1, 128) [f32],
        # o_ref: (TB, 26)  -- narrow output, masked lane stores hidden under DMA.
        x = x_ref[...]
        w = w_ref[...]
        if use_bf16_mxu:
            # bf16 feeds, f32 accumulation: ~3x fewer MXU passes than f32xf32.
            x = x.astype(jnp.bfloat16)
            w = w.astype(jnp.bfloat16)
        logits = jnp.dot(x, w, preferred_element_type=jnp.float32)
        logits = logits + b_ref[...]                      # f32 bias (keeps -1e30 sentinel exact)

        # Numerically-stable log_softmax along the feature axis.  Padded columns
        # carry bias = -1e30, so they never win the max and exp() to 0 in the lse.
        m = jnp.max(logits, axis=-1, keepdims=True)
        shifted = logits - m
        lse = jnp.log(jnp.sum(jnp.exp(shifted), axis=-1, keepdims=True))
        # Store only the 26 real feature columns (narrow output).
        o_ref[...] = (shifted - lse)[:, :N_SYMBOL].astype(o_ref.dtype)
    return kernel


def _reference(x, weight, bias):
    logits = x @ weight.T + bias
    return jax.nn.log_softmax(logits, axis=1)


def prepare_params(weight, bias):
    """Pad nn.Linear params once (hoisted out of the per-call path).

    weight: (out, in) torch-style; bias: (out,).
    Returns w_pad (26, 128) and b_pad (1, 128) f32 with -1e30 in padded columns.
    """
    w_pad = jnp.zeros((N_SYMBOL, LANES), dtype=jnp.float32)
    w_pad = w_pad.at[:, :N_SYMBOL].set(weight.T.astype(jnp.float32))
    b_pad = jnp.full((1, LANES), NEG_INF, dtype=jnp.float32)
    b_pad = b_pad.at[0, :N_SYMBOL].set(bias.astype(jnp.float32))
    return w_pad, b_pad


@functools.partial(jax.jit,
                   static_argnames=("block_batch", "use_bf16_mxu",
                                    "use_pallas", "min_pallas_batch"))
def net_forward(x, w_pad, b_pad, *, block_batch=2048, use_bf16_mxu=True,
                use_pallas=None, min_pallas_batch=256):
    """x: (B, 26); w_pad/b_pad from prepare_params()."""
    B, F = x.shape
    assert F == N_SYMBOL
    assert w_pad.shape == (N_SYMBOL, LANES)
    assert b_pad.shape == (1, LANES)

    # For tiny batches the fixed kernel-launch overhead dwarfs the ~1.4 Kflop of
    # work; let XLA fuse it instead (overridable for testing).
    if use_pallas is None:
        use_pallas = B >= min_pallas_batch
    if not use_pallas:
        logits = x @ w_pad[:, :N_SYMBOL] + b_pad[0, :N_SYMBOL]
        return jax.nn.log_softmax(logits, axis=1)

    tb = min(block_batch, _round_up(B, 8))       # multiple of 8 sublanes
    grid = (pl.cdiv(B, tb),)

    cost = pl.CostEstimate(
        flops=2 * B * N_SYMBOL * LANES,
        # exp on all 128 padded lanes per row + one log per row.
        transcendentals=B * (LANES + 1),
        bytes_accessed=(x.size * x.dtype.itemsize
                        + w_pad.size * w_pad.dtype.itemsize
                        + b_pad.size * b_pad.dtype.itemsize
                        + B * N_SYMBOL * 4),      # narrow (B, 26) f32 output
    )

    out = pl.pallas_call(
        _make_kernel(use_bf16_mxu),
        out_shape=jax.ShapeDtypeStruct((B, N_SYMBOL), jnp.float32),
        grid_spec=pltpu.PrefetchScalarGridSpec(
            num_scalar_prefetch=0,
            grid=grid,
            in_specs=[
                pl.BlockSpec((tb, N_SYMBOL), lambda i: (i, 0)),     # x tile (streams)
                pl.BlockSpec((N_SYMBOL, LANES), lambda i: (0, 0)),  # W, VMEM-resident
                pl.BlockSpec((1, LANES), lambda i: (0, 0)),         # bias, VMEM-resident
            ],
            out_specs=pl.BlockSpec((tb, N_SYMBOL), lambda i: (i, 0)),  # narrow output
        ),
        compiler_params=pltpu.CompilerParams(
            # NOTE: on v7x, sharding the batch axis across both TensorCores via
            # pltpu.CORE_PARALLEL (or pl.core_map) can be up to ~2x for large B;
            # kept as plain "parallel" here for cross-generation portability.
            dimension_semantics=("parallel",),
            vmem_limit_bytes=32 * 1024 * 1024,
        ),
        cost_estimate=cost,
    )(x, w_pad, b_pad)
    return out


def net_forward_from_linear(x, weight, bias, **kwargs):
    """Convenience wrapper taking raw nn.Linear-style params."""
    w_pad, b_pad = prepare_params(weight, bias)
    return net_forward(x, w_pad, b_pad, **kwargs)


if __name__ == "__main__":
    key = jax.random.PRNGKey(0)
    kx1, kx2, kw, kb = jax.random.split(key, 4)

    # Deterministic synthetic parameters (same shapes as nn.Linear(26, 26)).
    bound = 1.0 / jnp.sqrt(jnp.float32(N_SYMBOL))
    weight = jax.random.uniform(kw, (N_SYMBOL, N_SYMBOL),
                                minval=-bound, maxval=bound, dtype=jnp.float32)
    bias = jax.random.uniform(kb, (N_SYMBOL,),
                              minval=-bound, maxval=bound, dtype=jnp.float32)

    # Pad the parameters once (hoisted out of the forward path).
    w_pad, b_pad = prepare_params(weight, bias)

    # Case 1: small batch, force the Pallas path with the exact f32 MXU path
    # (single 8-row tile); must match the reference tightly.
    x_small = jax.random.normal(kx1, (8, N_SYMBOL), dtype=jnp.float32)
    out_small = jax.block_until_ready(
        net_forward(x_small, w_pad, b_pad, use_pallas=True, use_bf16_mxu=False))
    ref_small = _reference(x_small, weight, bias)
    assert out_small.shape == (8, N_SYMBOL)
    assert jnp.allclose(out_small, ref_small, atol=1e-5, rtol=1e-5), \
        "small-batch (f32 MXU) mismatch vs reference"

    # Case 2: larger batch on the default fast path (bf16 MXU feeds, f32 acc),
    # block_batch=512 to exercise a multi-step grid with a partial edge tile
    # (tiles of 512 + 488 rows) and the narrow (B, 26) output.
    x_big = jax.random.normal(kx2, (1000, N_SYMBOL), dtype=jnp.float32)
    out_big = jax.block_until_ready(
        net_forward(x_big, w_pad, b_pad, use_pallas=True, block_batch=512))
    ref_big = _reference(x_big, weight, bias)
    assert out_big.shape == (1000, N_SYMBOL)
    assert jnp.allclose(out_big, ref_big, atol=3e-2, rtol=3e-2), \
        "large-batch (bf16 MXU) mismatch vs reference"

    # Sanity: probabilities sum to 1 per row.
    row_sums = jnp.sum(jnp.exp(out_big), axis=1)
    assert jnp.allclose(row_sums, jnp.ones_like(row_sums), atol=1e-3), \
        "log_softmax rows do not normalize"

    print("KERNEL_OK")
</pallas_src>

<mosaic_0001>
module attributes {stable_mosaic.version = 11 : i64} {
  func.func @kernel(%arg0: i32, %arg1: memref<8x26xf32, #tpu.memory_space<vmem>>, %arg2: memref<26x128xf32, #tpu.memory_space<vmem>>, %arg3: memref<1x128xf32, #tpu.memory_space<vmem>>, %arg4: memref<8x26xf32, #tpu.memory_space<vmem>>) attributes {dimension_semantics = [#tpu.dimension_semantics<parallel>], iteration_bounds = array<i64: 1>, scalar_prefetch = 0 : i64, scratch_operands = 0 : i64, tpu.core_type = #tpu.core_type<tc>, window_params = [{transform_indices = @transform_0, window_bounds = array<i64: 8, 26>}, {pipeline_mode = #tpu.pipeline_mode<synchronous>, transform_indices = @transform_1, window_bounds = array<i64: 26, 128>}, {pipeline_mode = #tpu.pipeline_mode<synchronous>, transform_indices = @transform_2, window_bounds = array<i64: 1, 128>}, {transform_indices = @transform_3, window_bounds = array<i64: 8, 26>}]} {
    %c0 = arith.constant 0 : index
    %c0_0 = arith.constant 0 : index
    %0 = vector.load %arg1[%c0, %c0_0] : memref<8x26xf32, #tpu.memory_space<vmem>>, vector<8x26xf32>
    %c0_1 = arith.constant 0 : index
    %c0_2 = arith.constant 0 : index
    %1 = vector.load %arg2[%c0_1, %c0_2] : memref<26x128xf32, #tpu.memory_space<vmem>>, vector<26x128xf32>
    %cst = arith.constant dense<0.000000e+00> : vector<8x128xf32>
    %2 = tpu.matmul %0, %1, %cst {dimension_numbers = #tpu.dot_dimension_numbers<[1], [0], [0], [1], [0, 0, 1, 1], [], []>} : vector<8x26xf32>, vector<26x128xf32>, vector<8x128xf32> -> vector<8x128xf32>
    %c0_3 = arith.constant 0 : index
    %c0_4 = arith.constant 0 : index
    %3 = vector.load %arg3[%c0_3, %c0_4] : memref<1x128xf32, #tpu.memory_space<vmem>>, vector<1x128xf32>
    %4 = vector.broadcast %3 : vector<1x128xf32> to vector<8x128xf32>
    %5 = arith.addf %2, %4 : vector<8x128xf32>
    %cst_5 = arith.constant dense<0xFF800000> : vector<8xf32>
    %6 = vector.multi_reduction <maximumf>, %5, %cst_5 [1] : vector<8x128xf32> to vector<8xf32>
    %7 = vector.shape_cast %6 : vector<8xf32> to vector<8x1xf32>
    %8 = vector.broadcast %7 : vector<8x1xf32> to vector<8x128xf32>
    %9 = arith.subf %5, %8 : vector<8x128xf32>
    %10 = math.exp %9 : vector<8x128xf32>
    %cst_6 = arith.constant dense<0.000000e+00> : vector<8xf32>
    %11 = vector.multi_reduction <add>, %10, %cst_6 [1] : vector<8x128xf32> to vector<8xf32>
    %12 = vector.shape_cast %11 : vector<8xf32> to vector<8x1xf32>
    %13 = math.log %12 : vector<8x1xf32>
    %14 = vector.broadcast %13 : vector<8x1xf32> to vector<8x128xf32>
    %15 = arith.subf %9, %14 : vector<8x128xf32>
    %16 = vector.extract_strided_slice %15 {offsets = [0, 0], sizes = [8, 26], strides = [1, 1]} : vector<8x128xf32> to vector<8x26xf32>
    %c0_7 = arith.constant 0 : index
    %c0_8 = arith.constant 0 : index
    %17 = vector.load %arg4[%c0_7, %c0_8] : memref<8x26xf32, #tpu.memory_space<vmem>>, vector<8x26xf32>
    tpu.vector_store %arg4[%c0_7, %c0_8], %16 {strides = array<i32>} : memref<8x26xf32, #tpu.memory_space<vmem>>, vector<8x26xf32>,
    return
  }
  func.func @transform_0(%arg0: i32) -> (i32, i32) {
    %c0_i32 = arith.constant 0 : i32
    %c0_i32_0 = arith.constant 0 : i32
    return %arg0, %c0_i32 : i32, i32
  }
  func.func @transform_1(%arg0: i32) -> (i32, i32) {
    %c0_i32 = arith.constant 0 : i32
    %c0_i32_0 = arith.constant 0 : i32
    %c0_i32_1 = arith.constant 0 : i32
    return %c0_i32, %c0_i32_0 : i32, i32
  }
  func.func @transform_2(%arg0: i32) -> (i32, i32) {
    %c0_i32 = arith.constant 0 : i32
    %c0_i32_0 = arith.constant 0 : i32
    %c0_i32_1 = arith.constant 0 : i32
    return %c0_i32, %c0_i32_0 : i32, i32
  }
  func.func @transform_3(%arg0: i32) -> (i32, i32) {
    %c0_i32 = arith.constant 0 : i32
    %c0_i32_0 = arith.constant 0 : i32
    return %arg0, %c0_i32 : i32, i32
  }
}

</mosaic_0001>

<llo_original>
// kernel: net_forward.1
$region0: #{net_forward.1}
  #allocation0 [shape = 'u32[]', space=smem, size = 0x4, offset = 0x4, fixed_abs, tag = 'smem constant byte address 0x4 - core index']
  #allocation1 [shape = 'u32[144,128]{1,0:T(1,128)}', space=vmem, size = 0x12000, scoped, tag = 'internal scratch']
  %s0 = inlined_call_operand.hbm [shape: f32[8,26], index: 0, kind: input, shape index: {}]
  %s1 = inlined_call_operand.hbm [shape: f32[26,128], index: 1, kind: input, shape index: {}]
  %s2 = inlined_call_operand.vmem [shape: f32[1,128], index: 2, kind: input, shape index: {}]
  %s3 = inlined_call_operand.hbm [shape: f32[8,26], index: 3, kind: output, shape index: {}]
  %s4 = sld [smem:[#allocation0]]
  $region30: #{net_forward.1} parent=0
    _
  %s6 = ssub.s32 1, %s4
  %s7 = scalar_select 0, %s6, %s4
  $region1: #{net_forward.1} parent=0
    #allocation2 [shape = 'u8[4096]{0}', space=vmem, size = 0x1000, scoped, tag = 'input window, operand 0, single buffered']
    #allocation3 [shape = 's32[1]{0}', space=sflag, size = 0x4, scoped, tag = 'scoped memory for net_forward.1']
    #allocation4 [shape = 's32[1]{0}', space=sflag, size = 0x4, scoped, tag = 'scoped memory for net_forward.1']
    #allocation5 [shape = 'u8[16384]{0}', space=vmem, size = 0x4000, scoped, tag = 'input window, operand 1, single buffered']
    #allocation6 [shape = 's32[1]{0}', space=sflag, size = 0x4, scoped, tag = 'scoped memory for net_forward.1']
    #allocation7 [shape = 'u8[4096]{0}', space=vmem, size = 0x1000, scoped, tag = 'output window, operand 0, single buffered']
    %8 = vsyncpa [#allocation3], 0
    %9 = vsyncpa [#allocation6], 0
    %10 = vsyncpa [#allocation4], 0
    // Predicated region
    $region2: #{net_forward.1} parent=1 // pred_check
      _
    $region3: #{net_forward.1} parent=1 // pred_check_branch
      %12 = sbr.rel (0) target = $region5
    $region4: #{net_forward.1} parent=1 // pred_region
      %s14 = ssub.s32 128, 128
      %15 = vsyncadd [#allocation3], %s14
      %s17 = sshll.u32 [#allocation2], 4
      %s18 = int_to_ptr.vmem [resolvable:$true] %s17
      %20 = dma.hbm_to_vmem [thread:$0]  %s0, 128, %s18, [#allocation3]
    $region5: #{net_forward.1} parent=1 // pred_fallthru
      _
    // Predicated region
    $region6: #{net_forward.1} parent=1 // pred_check
      _
    $region7: #{net_forward.1} parent=1 // pred_check_branch
      %22 = sbr.rel (0) target = $region9
    $region8: #{net_forward.1} parent=1 // pred_region
      %s24 = ssub.s32 512, 512
      %25 = vsyncadd [#allocation6], %s24
      %s26 = sshll.u32 [#allocation5], 4
      %s27 = int_to_ptr.vmem [resolvable:$true] %s26
      %32 = dma.hbm_to_vmem [thread:$0]  %s1, 512, %s27, [#allocation6], 128, 128, 8
    $region9: #{net_forward.1} parent=1 // pred_fallthru
      _
    // Predicated region
    $region10: #{net_forward.1} parent=1 // pred_check
      _
    $region11: #{net_forward.1} parent=1 // pred_check_branch
      %34 = sbr.rel (0) target = $region13
    $region12: #{net_forward.1} parent=1 // pred_region
      _
    $region13: #{net_forward.1} parent=1 // pred_fallthru
      _
    // Predicated region
    $region14: #{net_forward.1} parent=1 // pred_check
      _
    $region15: #{net_forward.1} parent=1 // pred_check_branch
      %36 = sbr.rel (0) target = $region17
    $region16: #{net_forward.1} parent=1 // pred_region
      %37 = dma.done [#allocation3], 128
    $region17: #{net_forward.1} parent=1 // pred_fallthru
      _
    // Predicated region
    $region18: #{net_forward.1} parent=1 // pred_check
      _
    $region19: #{net_forward.1} parent=1 // pred_check_branch
      %39 = sbr.rel (0) target = $region21
    $region20: #{net_forward.1} parent=1 // pred_region
      %40 = dma.done [#allocation6], 512
    $region21: #{net_forward.1} parent=1 // pred_fallthru
      _
    %v41 = vld [vmem:[#allocation2] sm:$0xff]
    %v42 = vld [vmem:[#allocation5] sm:$0xff]
    %v43 = vld [vmem:[#allocation5 + $0x8] sm:$0xff]
    %v44 = vld [vmem:[#allocation5 + $0x10] sm:$0xff]
    %v45 = vld [vmem:[#allocation5 + $0x18] sm:$0x3]
    %v46 = vld [vmem:[%s2] sm:$0x1]
    %v48 = vlaneseq
    %v49 = vshrl.u32 %v48, 7
    %v50 = vsub.s32 0, %v49
    %v51 = vrot.slane %v46, %v50
    %vm53 = vcmask 211968
    %v55 = vsel %vm53, %v41, 0
    %vm57 = vcmask 1041408
    %v59 = vsel %vm57, %v45, 0
    %61 = vmatprep.subr.mxu0 0.0
    %62 = vmatpush1.msra.mxu0 0.0
    %63 = vmatprep.subr.mxu0 0.0
    %64 = vmatpush1.msra.mxu0 0.0
    %65 = vmatprep.subr.mxu0 0.0
    %66 = vmatpush1.msra.mxu0 0.0
    %67 = vmatprep.subr.mxu0 0.0
    %68 = vmatpush1.msra.mxu0 0.0
    %69 = vmatprep.subr.mxu0 0.0
    %70 = vmatpush1.msra.mxu0 0.0
    %71 = vmatprep.subr.mxu0 0.0
    %72 = vmatpush1.msra.mxu0 0.0
    %73 = vmatprep.subr.mxu0 0.0
    %74 = vmatpush1.msra.mxu0 0.0
    %75 = vmatprep.subr.mxu0 0.0
    %76 = vmatpush1.msra.mxu0 0.0
    %77 = vmatprep.subr.mxu0 0.0
    %78 = vmatpush1.msra.mxu0 0.0
    %79 = vmatprep.subr.mxu0 0.0
    %80 = vmatpush1.msra.mxu0 0.0
    %81 = vmatprep.subr.mxu0 0.0
    %82 = vmatpush1.msra.mxu0 0.0
    %83 = vmatprep.subr.mxu0 0.0
    %84 = vmatpush1.msra.mxu0 0.0
    %85 = vmatprep.subr.mxu0 0.0
    %86 = vmatpush1.msra.mxu0 %v59
    %87 = vmatprep.subr.mxu0 0.0
    %88 = vmatpush1.msra.mxu0 %v44
    %89 = vmatprep.subr.mxu0 0.0
    %90 = vmatpush1.msra.mxu0 %v43
    %91 = vmatprep.subr.mxu0 0.0
    %92 = vmatpush1.msra.mxu0 %v42
    %93 = vmatprep.subr.mxu0 0.0
    %94 = vmatpush2.msra.mxu0 0.0
    %95 = vmatprep.subr.mxu0 0.0
    %96 = vmatpush2.msra.mxu0 0.0
    %97 = vmatprep.subr.mxu0 0.0
    %98 = vmatpush2.msra.mxu0 0.0
    %99 = vmatprep.subr.mxu0 0.0
    %100 = vmatpush2.msra.mxu0 0.0
    %101 = vmatprep.subr.mxu0 0.0
    %102 = vmatpush2.msra.mxu0 0.0
    %103 = vmatprep.subr.mxu0 0.0
    %104 = vmatpush2.msra.mxu0 0.0
    %105 = vmatprep.subr.mxu0 0.0
    %106 = vmatpush2.msra.mxu0 0.0
    %107 = vmatprep.subr.mxu0 0.0
    %108 = vmatpush2.msra.mxu0 0.0
    %109 = vmatprep.subr.mxu0 0.0
    %110 = vmatpush2.msra.mxu0 0.0
    %111 = vmatprep.subr.mxu0 0.0
    %112 = vmatpush2.msra.mxu0 0.0
    %113 = vmatprep.subr.mxu0 0.0
    %114 = vmatpush2.msra.mxu0 0.0
    %115 = vmatprep.subr.mxu0 0.0
    %116 = vmatpush2.msra.mxu0 0.0
    %117 = vmatprep.subr.mxu0 0.0
    %118 = vmatpush2.msra.mxu0 0.0
    %119 = vmatprep.subr.mxu0 0.0
    %120 = vmatpush2.msra.mxu0 0.0
    %121 = vmatprep.subr.mxu0 0.0
    %122 = vmatpush2.msra.mxu0 0.0
    %123 = vmatprep.subr.mxu0 0.0
    %124 = vmatpush2.msra.mxu0 0.0
    %125 = vmatprep.mubr.f32.mxu0 0.0
    %126 = vmatmul.mubr.f32.gmra.mxu0 %v55
    %v127 = vpop.f32.mrf.mxu0
    %v128 = vadd.f32 %v51, %v127
    %v129 = vpop.f32.mrf.mxu0
    %130 = vdwg.mxu0
    %131 = vmax.xlane.f32.xlu0 %v128
    %v132 = vpop.xlane.xlu0 %131
    %v133 = vsub.f32 %v128, %v132
    %v134 = vmul.f32 %v133, 1.442695
    %v135 = vpow.pop %v134
    %136 = vadd.xlane.f32.xlu0 %v135
    %v137 = vpop.xlane.xlu0 %136
    %v138 = vlog2.pop %v137
    %v139 = vmul.f32 %v138, 0.6931472
    %v140 = vsub.f32 %v133, %v139
    %141 = vst.msk [vmem:[#allocation7] sm:$0xff] %vm53, %v140
    // Predicated region
    $region22: #{net_forward.1} parent=1 // pred_check
      _
    $region23: #{net_forward.1} parent=1 // pred_check_branch
      %143 = sbr.rel (0) target = $region25
    $region24: #{net_forward.1} parent=1 // pred_region
      %s145 = ssub.s32 128, 128
      %146 = vsyncadd [#allocation4], %s145
      %s148 = sshll.u32 [#allocation7], 4
      %s149 = int_to_ptr.vmem [resolvable:$true] %s148
      %151 = dma.vmem_to_hbm [thread:$0]  %s149, 128, %s3, [#allocation4]
    $region25: #{net_forward.1} parent=1 // pred_fallthru
      _
    // Predicated region
    $region26: #{net_forward.1} parent=1 // pred_check
      _
    $region27: #{net_forward.1} parent=1 // pred_check_branch
      %153 = sbr.rel (0) target = $region29
    $region28: #{net_forward.1} parent=1 // pred_region
      %154 = dma.done [#allocation4], 128
    $region29: #{net_forward.1} parent=1 // pred_fallthru
      _
    %155 = vsyncpa [#allocation3], 1
    %156 = vsyncpa [#allocation6], 1
    %157 = vsyncpa [#allocation4], 1

</llo_original>
